<compile_context>
chip_gen: v5e
topology: v5e:2x2
jax: 0.10.0
libtpu: 0.0.40
codegen_flags: <defaults>
</compile_context>

<pallas_src>
import math
import functools

import jax
import jax.numpy as jnp
from jax import lax
from jax.experimental import pallas as pl
from jax.experimental.pallas import tpu as pltpu

_ONE_HOT_MAX_V = 2048   # one-hot MXU gather only for small vocabs (v5e-safe)
_UNROLL = 8


def _round_up(x, m):
    return ((x + m - 1) // m) * m


def _pick_tn(n):
    """Rows per output tile: large & lane/sublane dense, preferring a divisor
    of N so no padded tail (and no wrapper-side slice) is needed."""
    for cand in (512, 256, 128):
        if n % cand == 0:
            return cand
    if n <= 512:
        return _round_up(n, 8)
    return 256


def _vmem_capacity_bytes():
    try:
        return int(pltpu.get_tpu_info().vmem_capacity_bytes)
    except Exception:  # pragma: no cover - conservative fallback (v7x per-TC)
        return 64 * 1024 * 1024


# --------------------------------------------------------------------------
# Kernels
# --------------------------------------------------------------------------
def _embed_onehot_kernel(tok_ref, emb_ref, out_ref, *, scale):
    """Small-V path: vectorized gather as a one-hot matmul on the MXU."""
    tn = out_ref.shape[0]
    v = emb_ref.shape[0]
    ids = tok_ref[...]                                    # (TN, 1) int32, VMEM
    iota = lax.broadcasted_iota(jnp.int32, (tn, v), 1)    # (TN, V)
    one_hot = (iota == ids).astype(emb_ref.dtype)         # (TN, V)
    acc = jnp.dot(one_hot, emb_ref[...], preferred_element_type=jnp.float32)
    out_ref[...] = (acc * scale).astype(out_ref.dtype)    # fused scale, 1 store


def _embed_vmem_loop_kernel(tok_ref, emb_ref, out_ref, *, tn, scale):
    """Large-but-VMEM-resident table: unrolled row gather, scale fused into the
    per-row store (no extra read-modify-write sweep of the tile)."""
    # TODO(synk): switch to a vectorized jnp.take gather once Mosaic gather
    # lowering for (V, D) tables is verified on all target generations.
    def body(j, carry):
        tok = tok_ref[0, j]                               # SMEM scalar read
        out_ref[pl.ds(j, 1), :] = emb_ref[pl.ds(tok, 1), :] * scale
        return carry

    lax.fori_loop(0, tn, body, 0, unroll=_UNROLL)


def _embed_hbm_kernel(tok_cur_ref, tok_nxt_ref, emb_hbm, out_ref,
                      row_buf, sem, *, tn, scale):
    """Huge-V path: table stays in HBM. Per-row DMA gather double-buffered
    across grid steps; one byte-counted semaphore wait retires a whole tile."""
    i = pl.program_id(0)
    n = pl.num_programs(0)

    def issue(tok_smem, slot):
        def body(j, carry):
            tok = tok_smem[0, j]
            pltpu.make_async_copy(
                emb_hbm.at[pl.ds(tok, 1), :],
                row_buf.at[slot, pl.ds(j, 1), :],
                sem.at[slot],
            ).start()
            return carry
        lax.fori_loop(0, tn, body, 0, unroll=_UNROLL)

    @pl.when(i == 0)
    def _():
        issue(tok_cur_ref, 0)              # prime this tile's gathers

    @pl.when(i + 1 < n)
    def _():
        issue(tok_nxt_ref, (i + 1) % 2)    # prefetch next tile's gathers

    slot = i % 2
    # DMA semaphores count bytes: one wait over the full (TN, D) slot retires
    # all TN row copies issued on sem[slot].
    pltpu.make_async_copy(row_buf.at[slot], row_buf.at[slot],
                          sem.at[slot]).wait()
    out_ref[...] = row_buf[slot] * scale   # fused scale, single dense store


# --------------------------------------------------------------------------
# Wrapper
# --------------------------------------------------------------------------
def token_embedding(tokens, emb_table, *, strategy=None):
    """tokens: (B, S) ints; emb_table: (V, D). Returns (B, S, D) * sqrt(D).

    strategy: None (auto) | "onehot" | "loop" | "hbm" (mainly for testing).
    """
    B, S = tokens.shape
    V, D = emb_table.shape
    N = B * S
    dtype = emb_table.dtype
    itemsize = jnp.dtype(dtype).itemsize
    scale = math.sqrt(float(D))

    TN = _pick_tn(N)
    N_pad = _round_up(N, TN)
    num_tiles = N_pad // TN

    # Clamp ids (an OOB id would otherwise be an unchecked HBM gather) and pad
    # the tail with row-0 lookups that are sliced off below.
    # TODO(synk): nn.Embedding raises on OOB ids and supports padding_idx;
    # neither is modeled here.
    tok_flat = jnp.clip(tokens.reshape(-1).astype(jnp.int32), 0, V - 1)
    if N_pad != N:
        tok_flat = jnp.pad(tok_flat, (0, N_pad - N))

    table_bytes = V * D * itemsize
    out_tile_bytes = TN * D * itemsize
    onehot_tmp = TN * V * itemsize + TN * D * 4

    capacity = _vmem_capacity_bytes()
    budget = int(capacity * 0.75)          # generation-aware residency budget

    if strategy is None:
        if V <= _ONE_HOT_MAX_V and \
                2 * table_bytes + 2 * out_tile_bytes + onehot_tmp <= budget:
            strategy = "onehot"
        elif 2 * table_bytes + 2 * out_tile_bytes <= budget:
            strategy = "loop"
        else:
            strategy = "hbm"

    out_spec = pl.BlockSpec((TN, D), lambda i: (i, 0))
    out_shape = jax.ShapeDtypeStruct((N_pad, D), dtype)

    if strategy == "onehot":
        kernel = functools.partial(_embed_onehot_kernel, scale=scale)
        in_specs = [
            pl.BlockSpec((TN, 1), lambda i: (i, 0)),            # ids in VMEM
            pl.BlockSpec((V, D), lambda i: (0, 0)),             # resident table
        ]
        args = (tok_flat.reshape(N_pad, 1), emb_table)
        scratch = []
        semantics = ("parallel",)
        need = 2 * table_bytes + 2 * out_tile_bytes + onehot_tmp
    elif strategy == "loop":
        kernel = functools.partial(_embed_vmem_loop_kernel, tn=TN, scale=scale)
        in_specs = [
            pl.BlockSpec((1, TN), lambda i: (i, 0),
                         memory_space=pltpu.MemorySpace.SMEM),  # ids in SMEM
            pl.BlockSpec((V, D), lambda i: (0, 0)),             # resident table
        ]
        args = (tok_flat.reshape(num_tiles, TN), emb_table)
        scratch = []
        semantics = ("parallel",)
        need = 2 * table_bytes + 2 * out_tile_bytes
    elif strategy == "hbm":
        kernel = functools.partial(_embed_hbm_kernel, tn=TN, scale=scale)
        # Extra zero row so the "next tile" SMEM block index (i+1) is valid at
        # the last grid step.
        tok2d = jnp.concatenate(
            [tok_flat.reshape(num_tiles, TN),
             jnp.zeros((1, TN), jnp.int32)], axis=0)
        in_specs = [
            pl.BlockSpec((1, TN), lambda i: (i, 0),
                         memory_space=pltpu.MemorySpace.SMEM),      # this tile
            pl.BlockSpec((1, TN), lambda i: (i + 1, 0),
                         memory_space=pltpu.MemorySpace.SMEM),      # next tile
            pl.BlockSpec(memory_space=pl.ANY),                      # HBM table
        ]
        args = (tok2d, tok2d, emb_table)
        scratch = [pltpu.VMEM((2, TN, D), dtype),
                   pltpu.SemaphoreType.DMA((2,))]
        # Cross-step prefetch state (slot written at step i, read at i+1)
        # => grid axis must be sequential.
        semantics = ("arbitrary",)
        need = 4 * out_tile_bytes
    else:
        raise ValueError(f"unknown strategy: {strategy}")

    vmem_limit = int(min(max(need + (8 << 20), 32 << 20),
                         capacity - (4 << 20)))

    out_flat = pl.pallas_call(
        kernel,
        out_shape=out_shape,
        grid=(num_tiles,),
        in_specs=in_specs,
        out_specs=out_spec,
        scratch_shapes=scratch,
        compiler_params=pltpu.CompilerParams(
            dimension_semantics=semantics,
            vmem_limit_bytes=vmem_limit),
    )(*args)

    if N_pad != N:
        # TODO(synk): handle the ragged tail in-kernel (masked store) to avoid
        # this extra HBM pass; avoided entirely when TN divides B*S.
        out_flat = out_flat[:N]
    return out_flat.reshape(B, S, D)


# --------------------------------------------------------------------------
# Self-test
# --------------------------------------------------------------------------
if __name__ == "__main__":
    key = jax.random.PRNGKey(0)
    k1, k2, k3, k4, k5, k6 = jax.random.split(key, 6)

    # 1) Small vocab -> one-hot MXU path (auto-selected).
    B, S, V, D = 2, 8, 64, 128
    emb1 = jax.random.normal(k1, (V, D), dtype=jnp.float32)
    tok1 = jax.random.randint(k2, (B, S), 0, V, dtype=jnp.int32)
    ref1 = emb1[tok1] * math.sqrt(float(D))
    out1 = jax.block_until_ready(token_embedding(tok1, emb1))
    assert out1.shape == (B, S, D), out1.shape
    assert jnp.allclose(out1, ref1, rtol=5e-3, atol=1e-3), "onehot path mismatch"

    # 2) Mid vocab (> one-hot cap, fits VMEM) -> resident loop path.
    V2 = 4096
    emb2 = jax.random.normal(k3, (V2, D), dtype=jnp.float32)
    tok2 = jax.random.randint(k4, (B, S), 0, V2, dtype=jnp.int32)
    ref2 = emb2[tok2] * math.sqrt(float(D))
    out2 = jax.block_until_ready(token_embedding(tok2, emb2))
    assert jnp.allclose(out2, ref2, rtol=1e-6, atol=1e-6), "loop path mismatch"

    # 3) Forced HBM-gather path (two tiles -> exercises cross-step prefetch).
    B3, S3 = 8, 128
    emb3 = jax.random.normal(k5, (V, D), dtype=jnp.float32)
    tok3 = jax.random.randint(k6, (B3, S3), 0, V, dtype=jnp.int32)
    ref3 = emb3[tok3] * math.sqrt(float(D))
    out3 = jax.block_until_ready(token_embedding(tok3, emb3, strategy="hbm"))
    assert jnp.allclose(out3, ref3, rtol=1e-6, atol=1e-6), "hbm path mismatch"

    print("KERNEL_OK")
</pallas_src>

<mosaic_0001>
module attributes {stable_mosaic.version = 11 : i64} {
  func.func @_embed_onehot_kernel(%arg0: i32, %arg1: memref<16x1xi32, #tpu.memory_space<vmem>>, %arg2: memref<64x128xf32, #tpu.memory_space<vmem>>, %arg3: memref<16x128xf32, #tpu.memory_space<vmem>>) attributes {dimension_semantics = [#tpu.dimension_semantics<parallel>], iteration_bounds = array<i64: 1>, scalar_prefetch = 0 : i64, scratch_operands = 0 : i64, tpu.core_type = #tpu.core_type<tc>, window_params = [{transform_indices = @transform_0, window_bounds = array<i64: 16, 1>}, {pipeline_mode = #tpu.pipeline_mode<synchronous>, transform_indices = @transform_1, window_bounds = array<i64: 64, 128>}, {transform_indices = @transform_2, window_bounds = array<i64: 16, 128>}]} {
    %c0 = arith.constant 0 : index
    %c0_0 = arith.constant 0 : index
    %0 = vector.load %arg1[%c0, %c0_0] : memref<16x1xi32, #tpu.memory_space<vmem>>, vector<16x1xi32>
    %1 = tpu.iota {dimensions = array<i32: 1>} : vector<16x64xi32>
    %2 = vector.broadcast %0 : vector<16x1xi32> to vector<16x64xi32>
    %3 = arith.cmpi eq, %1, %2 : vector<16x64xi32>
    %4 = arith.extui %3 : vector<16x64xi1> to vector<16x64xi32>
    %5 = arith.sitofp %4 : vector<16x64xi32> to vector<16x64xf32>
    %c0_1 = arith.constant 0 : index
    %c0_2 = arith.constant 0 : index
    %6 = vector.load %arg2[%c0_1, %c0_2] : memref<64x128xf32, #tpu.memory_space<vmem>>, vector<64x128xf32>
    %cst = arith.constant dense<0.000000e+00> : vector<16x128xf32>
    %7 = tpu.matmul %5, %6, %cst {dimension_numbers = #tpu.dot_dimension_numbers<[1], [0], [0], [1], [0, 0, 1, 1], [], []>} : vector<16x64xf32>, vector<64x128xf32>, vector<16x128xf32> -> vector<16x128xf32>
    %cst_3 = arith.constant 11.3137083 : f32
    %8 = vector.broadcast %cst_3 : f32 to vector<16x128xf32>
    %9 = arith.mulf %7, %8 : vector<16x128xf32>
    %c0_4 = arith.constant 0 : index
    %c0_5 = arith.constant 0 : index
    %10 = vector.load %arg3[%c0_4, %c0_5] : memref<16x128xf32, #tpu.memory_space<vmem>>, vector<16x128xf32>
    tpu.vector_store %arg3[%c0_4, %c0_5], %9 {strides = array<i32>} : memref<16x128xf32, #tpu.memory_space<vmem>>, vector<16x128xf32>,
    return
  }
  func.func @transform_0(%arg0: i32) -> (i32, i32) {
    %c0_i32 = arith.constant 0 : i32
    %c0_i32_0 = arith.constant 0 : i32
    return %arg0, %c0_i32 : i32, i32
  }
  func.func @transform_1(%arg0: i32) -> (i32, i32) {
    %c0_i32 = arith.constant 0 : i32
    %c0_i32_0 = arith.constant 0 : i32
    %c0_i32_1 = arith.constant 0 : i32
    return %c0_i32, %c0_i32_0 : i32, i32
  }
  func.func @transform_2(%arg0: i32) -> (i32, i32) {
    %c0_i32 = arith.constant 0 : i32
    %c0_i32_0 = arith.constant 0 : i32
    return %arg0, %c0_i32 : i32, i32
  }
}

</mosaic_0001>

<llo_original>
// kernel: tpu_custom_call.1
$region0: #{tpu_custom_call.1}
  #allocation0 [shape = 'u32[]', space=smem, size = 0x4, offset = 0x4, fixed_abs, tag = 'smem constant byte address 0x4 - core index']
  #allocation1 [shape = 'u32[72,128]{1,0:T(1,128)}', space=vmem, size = 0x9000, scoped, tag = 'internal scratch']
  %s0 = inlined_call_operand.vmem [shape: s32[16,1], index: 0, kind: input, shape index: {}]
  %s1 = inlined_call_operand.hbm [shape: f32[64,128], index: 1, kind: input, shape index: {}]
  %s2 = inlined_call_operand.hbm [shape: f32[16,128], index: 2, kind: output, shape index: {}]
  %s3 = sld [smem:[#allocation0]]
  $region22: #{tpu_custom_call.1} parent=0
    _
  %s5 = ssub.s32 1, %s3
  %s6 = scalar_select 0, %s5, %s3
  $region1: #{tpu_custom_call.1} parent=0
    #allocation2 [shape = 'u8[32768]{0}', space=vmem, size = 0x8000, scoped, tag = 'input window, operand 1, single buffered']
    #allocation3 [shape = 's32[1]{0}', space=sflag, size = 0x4, scoped, tag = 'scoped memory for tpu_custom_call.1']
    #allocation4 [shape = 's32[1]{0}', space=sflag, size = 0x4, scoped, tag = 'scoped memory for tpu_custom_call.1']
    #allocation5 [shape = 'u8[8192]{0}', space=vmem, size = 0x2000, scoped, tag = 'output window, operand 0, single buffered']
    %7 = vsyncpa [#allocation3], 0
    %8 = vsyncpa [#allocation4], 0
    // Predicated region
    $region2: #{tpu_custom_call.1} parent=1 // pred_check
      _
    $region3: #{tpu_custom_call.1} parent=1 // pred_check_branch
      %10 = sbr.rel (0) target = $region5
    $region4: #{tpu_custom_call.1} parent=1 // pred_region
      _
    $region5: #{tpu_custom_call.1} parent=1 // pred_fallthru
      _
    // Predicated region
    $region6: #{tpu_custom_call.1} parent=1 // pred_check
      _
    $region7: #{tpu_custom_call.1} parent=1 // pred_check_branch
      %12 = sbr.rel (0) target = $region9
    $region8: #{tpu_custom_call.1} parent=1 // pred_region
      %14 = vsyncadd [#allocation3], 0
      %s15 = sshll.u32 %s1, 4
      %s16 = int_to_ptr.hbm [resolvable:$true] %s15
      %s17 = sshll.u32 [#allocation2], 4
      %s18 = int_to_ptr.vmem [resolvable:$true] %s17
      %23 = dma.hbm_to_vmem [thread:$0]  %s16, 1024, %s18, [#allocation3], 128, 128, 8
    $region9: #{tpu_custom_call.1} parent=1 // pred_fallthru
      _
    // Predicated region
    $region10: #{tpu_custom_call.1} parent=1 // pred_check
      _
    $region11: #{tpu_custom_call.1} parent=1 // pred_check_branch
      %25 = sbr.rel (0) target = $region13
    $region12: #{tpu_custom_call.1} parent=1 // pred_region
      %27 = dma.done [#allocation3], 1024
    $region13: #{tpu_custom_call.1} parent=1 // pred_fallthru
      _
    %v28 = vld [vmem:[%s0] sm:$0xff]
    %v29 = vld [vmem:[%s0 + $0x8] sm:$0xff]
    %v30 = vlaneseq
    %v31 = vand.u32 %v30, 127
    %32 = vset.pattern.permute.xlu0 0
    %33 = vperm.xlu0 %32, %v28
    %v34 = vpop.permute.xlu0 %33
    %35 = vset.pattern.permute.xlu0 0
    %36 = vperm.xlu0 %35, %v29
    %v37 = vpop.permute.xlu0 %36
    %vm38 = vcmp.eq.s32.totalorder %v31, %v34
    %vm39 = vcmp.eq.s32.totalorder %v31, %v37
    %v40 = vsel %vm38, 1, 0
    %v41 = vsel %vm39, 1, 0
    %v42 = vcvt.s32.f32 %v40
    %v43 = vcvt.s32.f32 %v41
    %v44 = vld [vmem:[#allocation2] sm:$0xff]
    %v45 = vld [vmem:[#allocation2 + $0x8] sm:$0xff]
    %v46 = vld [vmem:[#allocation2 + $0x10] sm:$0xff]
    %v47 = vld [vmem:[#allocation2 + $0x18] sm:$0xff]
    %v48 = vld [vmem:[#allocation2 + $0x20] sm:$0xff]
    %v49 = vld [vmem:[#allocation2 + $0x28] sm:$0xff]
    %v50 = vld [vmem:[#allocation2 + $0x30] sm:$0xff]
    %v51 = vld [vmem:[#allocation2 + $0x38] sm:$0xff]
    %vm52 = vcmask 523264
    %v54 = vsel %vm52, %v42, 0
    %v57 = vsel %vm52, %v43, 0
    %59 = vmatpush.msra.mxu0 0.0
    %60 = vmatpush.msra.mxu0 0.0
    %61 = vmatpush.msra.mxu0 0.0
    %62 = vmatpush.msra.mxu0 0.0
    %63 = vmatpush.msra.mxu0 0.0
    %64 = vmatpush.msra.mxu0 0.0
    %65 = vmatpush.msra.mxu0 0.0
    %66 = vmatpush.msra.mxu0 0.0
    %67 = vmatpush.msra.mxu0 %v51
    %68 = vmatpush.msra.mxu0 %v50
    %69 = vmatpush.msra.mxu0 %v49
    %70 = vmatpush.msra.mxu0 %v48
    %71 = vmatpush.msra.mxu0 %v47
    %72 = vmatpush.msra.mxu0 %v46
    %73 = vmatpush.msra.mxu0 %v45
    %74 = vmatpush.msra.mxu0 %v44
    %75 = vmatmul.f32.gmra.mxu0 %v54
    %v76 = vpop.f32.mrf.mxu0
    %v77 = vadd.f32 0.0, %v76
    %78 = vmatmul.f32.gmra.mxu0 %v57
    %v79 = vpop.f32.mrf.mxu0
    %v80 = vadd.f32 0.0, %v79
    %81 = vdwg.mxu0
    %v82 = vmul.f32 %v77, 11.313708
    %v83 = vmul.f32 %v80, 11.313708
    %84 = vst [vmem:[#allocation5] sm:$0xff] %v82
    %85 = vst [vmem:[#allocation5 + $0x8] sm:$0xff] %v83
    // Predicated region
    $region14: #{tpu_custom_call.1} parent=1 // pred_check
      _
    $region15: #{tpu_custom_call.1} parent=1 // pred_check_branch
      %87 = sbr.rel (0) target = $region17
    $region16: #{tpu_custom_call.1} parent=1 // pred_region
      %89 = vsyncadd [#allocation4], 0
      %s90 = sshll.u32 [#allocation5], 4
      %s91 = int_to_ptr.vmem [resolvable:$true] %s90
      %s92 = sshll.u32 %s2, 4
      %s93 = int_to_ptr.hbm [resolvable:$true] %s92
      %98 = dma.vmem_to_hbm [thread:$0]  %s91, 256, %s93, [#allocation4], 128, 128, 8
    $region17: #{tpu_custom_call.1} parent=1 // pred_fallthru
      _
    // Predicated region
    $region18: #{tpu_custom_call.1} parent=1 // pred_check
      _
    $region19: #{tpu_custom_call.1} parent=1 // pred_check_branch
      %100 = sbr.rel (0) target = $region21
    $region20: #{tpu_custom_call.1} parent=1 // pred_region
      %102 = dma.done [#allocation4], 256
    $region21: #{tpu_custom_call.1} parent=1 // pred_fallthru
      _
    %103 = vsyncpa [#allocation3], 1
    %104 = vsyncpa [#allocation4], 1

</llo_original>
